<compile_context>
chip_gen: v6e
topology: v6e:2x2x1
jax: 0.10.0
libtpu: 0.0.40
codegen_flags: <defaults>
</compile_context>

<pallas_src>
import jax
import jax.numpy as jnp
from jax import lax
from jax.experimental import pallas as pl
from jax.experimental.pallas import tpu as pltpu


def nce_loss_kernel(temp_ref, feats_ref, loss_ref):
    # feats rows: [vis (B) ; img (B) ; text (B) ; cap (B)]
    B = feats_ref.shape[0] // 4
    inv_b = 1.0 / B

    feats = feats_ref[...]                       # (4B, D), native dtype
    lhs = feats[: 2 * B]                         # [vis; img]  -> (2B, D)
    rhs = feats[2 * B:]                          # [text; cap] -> (2B, D)

    # One fused MXU push, contracting on the feature axis (no explicit .T).
    raw = lax.dot_general(
        lhs, rhs,
        dimension_numbers=(((1,), (1,)), ((), ())),
        preferred_element_type=jnp.float32,
    )                                            # (2B, 2B) f32

    scale = jnp.exp(temp_ref[...])               # (1, 1) exp on the vector path
    logits = raw * scale                         # broadcast multiply, applied once

    s1 = logits[:B, :B]                          # vis @ text.T * scale
    s2 = logits[:B, B:]                          # vis @ cap.T  * scale
    s3 = logits[B:, B:]                          # img @ cap.T  * scale
    # (img @ text.T quadrant is discarded — negligible waste at these sizes.)

    # Diagonal (label) terms extracted once from the fused block.
    row = lax.broadcasted_iota(jnp.int32, (2 * B, 2 * B), 0)
    col = lax.broadcasted_iota(jnp.int32, (2 * B, 2 * B), 1)
    zero = jnp.zeros_like(logits)
    d_main = jnp.where(row == col, logits, zero)       # s1 diag (top) + s3 diag (bottom)
    d_off = jnp.where(col == row + B, logits, zero)    # s2 diag (only exists for row < B)
    d1_mean = jnp.sum(jnp.where(row < B, d_main, zero)) * inv_b
    d3_mean = jnp.sum(jnp.where(row >= B, d_main, zero)) * inv_b
    d2_mean = jnp.sum(d_off) * inv_b

    def ce_pair(l, d_mean):
        # CE over rows + CE over columns with diagonal labels, means over batch.
        mx_r = jnp.max(l, axis=1, keepdims=True)                                  # (B,1)
        lse_r = jnp.log(jnp.sum(jnp.exp(l - mx_r), axis=1, keepdims=True)) + mx_r  # (B,1)
        mx_c = jnp.max(l, axis=0, keepdims=True)                                  # (1,B)
        lse_c = jnp.log(jnp.sum(jnp.exp(l - mx_c), axis=0, keepdims=True)) + mx_c  # (1,B)
        return (jnp.sum(lse_r) + jnp.sum(lse_c)) * inv_b - 2.0 * d_mean

    loss = ce_pair(s1, d1_mean) + ce_pair(s2, d2_mean) + ce_pair(s3, d3_mean)
    loss_ref[0, 0] = loss


def nce_learnable_temp_loss_vs_vc_fc(vis_feat, text_feat, img_feat, cap_feat, temp):
    """temp: shape (1,) float32 learnable parameter (log of the logit scale)."""
    # Pack the four small feature tensors into one VMEM slab: one DMA.
    feats = jnp.concatenate([vis_feat, img_feat, text_feat, cap_feat], axis=0)
    temp2d = jnp.reshape(temp, (1, 1)).astype(jnp.float32)
    out = pl.pallas_call(
        nce_loss_kernel,
        out_shape=jax.ShapeDtypeStruct((1, 1), jnp.float32),
        in_specs=[
            pl.BlockSpec(memory_space=pltpu.MemorySpace.VMEM),   # temp (1, 1)
            pl.BlockSpec(memory_space=pltpu.MemorySpace.VMEM),   # packed features (4B, D)
        ],
        out_specs=pl.BlockSpec(memory_space=pltpu.MemorySpace.SMEM),
    )(temp2d, feats)
    return out[0, 0]


def _reference(vis, text, img, cap, temp):
    scale = jnp.exp(temp[0])

    def ce(logits, axis):
        logp = jax.nn.log_softmax(logits, axis=axis)
        return -jnp.mean(jnp.diagonal(logp))

    s1 = vis @ text.T * scale
    s2 = vis @ cap.T * scale
    s3 = img @ cap.T * scale
    return (ce(s1, 1) + ce(s1, 0) + ce(s2, 1) + ce(s2, 0) + ce(s3, 1) + ce(s3, 0))


if __name__ == "__main__":
    B, D = 8, 32  # small batch of aligned feature pairs, hidden dim 32
    key = jax.random.PRNGKey(0)
    k1, k2, k3, k4 = jax.random.split(key, 4)

    vis_feat = jax.random.normal(k1, (B, D), dtype=jnp.float32)
    text_feat = jax.random.normal(k2, (B, D), dtype=jnp.float32)
    img_feat = jax.random.normal(k3, (B, D), dtype=jnp.float32)
    cap_feat = jax.random.normal(k4, (B, D), dtype=jnp.float32)
    # Deterministic learnable temperature parameter (CLIP-style init: log(1/0.07)).
    temp = jnp.array([jnp.log(1.0 / 0.07)], dtype=jnp.float32)

    loss = nce_learnable_temp_loss_vs_vc_fc(vis_feat, text_feat, img_feat, cap_feat, temp)
    loss = jax.block_until_ready(loss)

    ref = _reference(vis_feat, text_feat, img_feat, cap_feat, temp)
    assert jnp.allclose(loss, ref, rtol=1e-5, atol=1e-5), (loss, ref)
    print("KERNEL_OK")
</pallas_src>

<mosaic_0001>
module attributes {stable_mosaic.version = 11 : i64} {
  func.func @nce_loss_kernel(%arg0: memref<1x1xf32, #tpu.memory_space<vmem>>, %arg1: memref<32x32xf32, #tpu.memory_space<vmem>>, %arg2: memref<1x1xf32, #tpu.memory_space<smem>>) attributes {dimension_semantics = [], scalar_prefetch = 0 : i64, scratch_operands = 0 : i64, tpu.core_type = #tpu.core_type<tc>} {
    %c0 = arith.constant 0 : index
    %c0_0 = arith.constant 0 : index
    %0 = vector.load %arg1[%c0, %c0_0] : memref<32x32xf32, #tpu.memory_space<vmem>>, vector<32x32xf32>
    %1 = vector.extract_strided_slice %0 {offsets = [0, 0], sizes = [16, 32], strides = [1, 1]} : vector<32x32xf32> to vector<16x32xf32>
    %2 = vector.extract_strided_slice %0 {offsets = [16, 0], sizes = [16, 32], strides = [1, 1]} : vector<32x32xf32> to vector<16x32xf32>
    %cst = arith.constant dense<0.000000e+00> : vector<16x16xf32>
    %3 = tpu.matmul %1, %2, %cst {dimension_numbers = #tpu.dot_dimension_numbers<[1], [1], [0], [0], [0, 0, 1, 0], [], []>} : vector<16x32xf32>, vector<16x32xf32>, vector<16x16xf32> -> vector<16x16xf32>
    %c0_1 = arith.constant 0 : index
    %c0_2 = arith.constant 0 : index
    %4 = vector.load %arg0[%c0_1, %c0_2] : memref<1x1xf32, #tpu.memory_space<vmem>>, vector<1x1xf32>
    %5 = math.exp %4 : vector<1x1xf32>
    %6 = vector.broadcast %5 : vector<1x1xf32> to vector<16x16xf32>
    %7 = arith.mulf %3, %6 : vector<16x16xf32>
    %8 = vector.extract_strided_slice %7 {offsets = [0, 0], sizes = [8, 8], strides = [1, 1]} : vector<16x16xf32> to vector<8x8xf32>
    %9 = vector.extract_strided_slice %7 {offsets = [0, 8], sizes = [8, 8], strides = [1, 1]} : vector<16x16xf32> to vector<8x8xf32>
    %10 = vector.extract_strided_slice %7 {offsets = [8, 8], sizes = [8, 8], strides = [1, 1]} : vector<16x16xf32> to vector<8x8xf32>
    %11 = tpu.iota {dimensions = array<i32: 0>} : vector<16x16xi32>
    %12 = tpu.iota {dimensions = array<i32: 1>} : vector<16x16xi32>
    %cst_3 = arith.constant 0.000000e+00 : f32
    %13 = vector.broadcast %cst_3 : f32 to vector<16x16xf32>
    %14 = arith.cmpi eq, %11, %12 : vector<16x16xi32>
    %15 = arith.select %14, %7, %13 : vector<16x16xi1>, vector<16x16xf32>
    %c8_i32 = arith.constant 8 : i32
    %16 = vector.broadcast %c8_i32 : i32 to vector<16x16xi32>
    %17 = arith.addi %11, %16 : vector<16x16xi32>
    %18 = arith.cmpi eq, %12, %17 : vector<16x16xi32>
    %19 = arith.select %18, %7, %13 : vector<16x16xi1>, vector<16x16xf32>
    %c8_i32_4 = arith.constant 8 : i32
    %20 = vector.broadcast %c8_i32_4 : i32 to vector<16x16xi32>
    %21 = arith.cmpi slt, %11, %20 : vector<16x16xi32>
    %22 = arith.select %21, %15, %13 : vector<16x16xi1>, vector<16x16xf32>
    %23 = vector.shape_cast %22 : vector<16x16xf32> to vector<1x16x16xf32>
    %cst_5 = arith.constant dense<0.000000e+00> : vector<1xf32>
    %24 = vector.multi_reduction <add>, %23, %cst_5 [1, 2] : vector<1x16x16xf32> to vector<1xf32>
    %25 = vector.shape_cast %24 : vector<1xf32> to vector<1x1x1xf32>
    %26 = vector.extract %25[0, 0, 0] : f32 from vector<1x1x1xf32>
    %cst_6 = arith.constant 1.250000e-01 : f32
    %27 = arith.mulf %26, %cst_6 : f32
    %c8_i32_7 = arith.constant 8 : i32
    %28 = vector.broadcast %c8_i32_7 : i32 to vector<16x16xi32>
    %29 = arith.cmpi sge, %11, %28 : vector<16x16xi32>
    %30 = arith.select %29, %15, %13 : vector<16x16xi1>, vector<16x16xf32>
    %31 = vector.shape_cast %30 : vector<16x16xf32> to vector<1x16x16xf32>
    %cst_8 = arith.constant dense<0.000000e+00> : vector<1xf32>
    %32 = vector.multi_reduction <add>, %31, %cst_8 [1, 2] : vector<1x16x16xf32> to vector<1xf32>
    %33 = vector.shape_cast %32 : vector<1xf32> to vector<1x1x1xf32>
    %34 = vector.extract %33[0, 0, 0] : f32 from vector<1x1x1xf32>
    %cst_9 = arith.constant 1.250000e-01 : f32
    %35 = arith.mulf %34, %cst_9 : f32
    %36 = vector.shape_cast %19 : vector<16x16xf32> to vector<1x16x16xf32>
    %cst_10 = arith.constant dense<0.000000e+00> : vector<1xf32>
    %37 = vector.multi_reduction <add>, %36, %cst_10 [1, 2] : vector<1x16x16xf32> to vector<1xf32>
    %38 = vector.shape_cast %37 : vector<1xf32> to vector<1x1x1xf32>
    %39 = vector.extract %38[0, 0, 0] : f32 from vector<1x1x1xf32>
    %cst_11 = arith.constant 1.250000e-01 : f32
    %40 = arith.mulf %39, %cst_11 : f32
    %cst_12 = arith.constant dense<0xFF800000> : vector<8xf32>
    %41 = vector.multi_reduction <maximumf>, %8, %cst_12 [1] : vector<8x8xf32> to vector<8xf32>
    %42 = vector.shape_cast %41 : vector<8xf32> to vector<8x1xf32>
    %43 = vector.broadcast %42 : vector<8x1xf32> to vector<8x8xf32>
    %44 = arith.subf %8, %43 : vector<8x8xf32>
    %45 = math.exp %44 : vector<8x8xf32>
    %cst_13 = arith.constant dense<0.000000e+00> : vector<8xf32>
    %46 = vector.multi_reduction <add>, %45, %cst_13 [1] : vector<8x8xf32> to vector<8xf32>
    %47 = vector.shape_cast %46 : vector<8xf32> to vector<8x1xf32>
    %48 = math.log %47 : vector<8x1xf32>
    %49 = arith.addf %48, %42 : vector<8x1xf32>
    %cst_14 = arith.constant dense<0xFF800000> : vector<8xf32>
    %50 = vector.multi_reduction <maximumf>, %8, %cst_14 [0] : vector<8x8xf32> to vector<8xf32>
    %51 = vector.shape_cast %50 : vector<8xf32> to vector<1x8xf32>
    %52 = vector.broadcast %51 : vector<1x8xf32> to vector<8x8xf32>
    %53 = arith.subf %8, %52 : vector<8x8xf32>
    %54 = math.exp %53 : vector<8x8xf32>
    %cst_15 = arith.constant dense<0.000000e+00> : vector<8xf32>
    %55 = vector.multi_reduction <add>, %54, %cst_15 [0] : vector<8x8xf32> to vector<8xf32>
    %56 = vector.shape_cast %55 : vector<8xf32> to vector<1x8xf32>
    %57 = math.log %56 : vector<1x8xf32>
    %58 = arith.addf %57, %51 : vector<1x8xf32>
    %59 = vector.shape_cast %49 : vector<8x1xf32> to vector<1x8x1xf32>
    %cst_16 = arith.constant dense<0.000000e+00> : vector<1xf32>
    %60 = vector.multi_reduction <add>, %59, %cst_16 [1, 2] : vector<1x8x1xf32> to vector<1xf32>
    %61 = vector.shape_cast %60 : vector<1xf32> to vector<1x1x1xf32>
    %62 = vector.extract %61[0, 0, 0] : f32 from vector<1x1x1xf32>
    %63 = vector.shape_cast %58 : vector<1x8xf32> to vector<1x1x8xf32>
    %cst_17 = arith.constant dense<0.000000e+00> : vector<1xf32>
    %64 = vector.multi_reduction <add>, %63, %cst_17 [1, 2] : vector<1x1x8xf32> to vector<1xf32>
    %65 = vector.shape_cast %64 : vector<1xf32> to vector<1x1x1xf32>
    %66 = vector.extract %65[0, 0, 0] : f32 from vector<1x1x1xf32>
    %67 = arith.addf %62, %66 : f32
    %cst_18 = arith.constant 1.250000e-01 : f32
    %68 = arith.mulf %67, %cst_18 : f32
    %cst_19 = arith.constant 2.000000e+00 : f32
    %69 = arith.mulf %cst_19, %27 : f32
    %70 = arith.subf %68, %69 : f32
    %cst_20 = arith.constant dense<0xFF800000> : vector<8xf32>
    %71 = vector.multi_reduction <maximumf>, %9, %cst_20 [1] : vector<8x8xf32> to vector<8xf32>
    %72 = vector.shape_cast %71 : vector<8xf32> to vector<8x1xf32>
    %73 = vector.broadcast %72 : vector<8x1xf32> to vector<8x8xf32>
    %74 = arith.subf %9, %73 : vector<8x8xf32>
    %75 = math.exp %74 : vector<8x8xf32>
    %cst_21 = arith.constant dense<0.000000e+00> : vector<8xf32>
    %76 = vector.multi_reduction <add>, %75, %cst_21 [1] : vector<8x8xf32> to vector<8xf32>
    %77 = vector.shape_cast %76 : vector<8xf32> to vector<8x1xf32>
    %78 = math.log %77 : vector<8x1xf32>
    %79 = arith.addf %78, %72 : vector<8x1xf32>
    %cst_22 = arith.constant dense<0xFF800000> : vector<8xf32>
    %80 = vector.multi_reduction <maximumf>, %9, %cst_22 [0] : vector<8x8xf32> to vector<8xf32>
    %81 = vector.shape_cast %80 : vector<8xf32> to vector<1x8xf32>
    %82 = vector.broadcast %81 : vector<1x8xf32> to vector<8x8xf32>
    %83 = arith.subf %9, %82 : vector<8x8xf32>
    %84 = math.exp %83 : vector<8x8xf32>
    %cst_23 = arith.constant dense<0.000000e+00> : vector<8xf32>
    %85 = vector.multi_reduction <add>, %84, %cst_23 [0] : vector<8x8xf32> to vector<8xf32>
    %86 = vector.shape_cast %85 : vector<8xf32> to vector<1x8xf32>
    %87 = math.log %86 : vector<1x8xf32>
    %88 = arith.addf %87, %81 : vector<1x8xf32>
    %89 = vector.shape_cast %79 : vector<8x1xf32> to vector<1x8x1xf32>
    %cst_24 = arith.constant dense<0.000000e+00> : vector<1xf32>
    %90 = vector.multi_reduction <add>, %89, %cst_24 [1, 2] : vector<1x8x1xf32> to vector<1xf32>
    %91 = vector.shape_cast %90 : vector<1xf32> to vector<1x1x1xf32>
    %92 = vector.extract %91[0, 0, 0] : f32 from vector<1x1x1xf32>
    %93 = vector.shape_cast %88 : vector<1x8xf32> to vector<1x1x8xf32>
    %cst_25 = arith.constant dense<0.000000e+00> : vector<1xf32>
    %94 = vector.multi_reduction <add>, %93, %cst_25 [1, 2] : vector<1x1x8xf32> to vector<1xf32>
    %95 = vector.shape_cast %94 : vector<1xf32> to vector<1x1x1xf32>
    %96 = vector.extract %95[0, 0, 0] : f32 from vector<1x1x1xf32>
    %97 = arith.addf %92, %96 : f32
    %cst_26 = arith.constant 1.250000e-01 : f32
    %98 = arith.mulf %97, %cst_26 : f32
    %cst_27 = arith.constant 2.000000e+00 : f32
    %99 = arith.mulf %cst_27, %40 : f32
    %100 = arith.subf %98, %99 : f32
    %101 = arith.addf %70, %100 : f32
    %cst_28 = arith.constant dense<0xFF800000> : vector<8xf32>
    %102 = vector.multi_reduction <maximumf>, %10, %cst_28 [1] : vector<8x8xf32> to vector<8xf32>
    %103 = vector.shape_cast %102 : vector<8xf32> to vector<8x1xf32>
    %104 = vector.broadcast %103 : vector<8x1xf32> to vector<8x8xf32>
    %105 = arith.subf %10, %104 : vector<8x8xf32>
    %106 = math.exp %105 : vector<8x8xf32>
    %cst_29 = arith.constant dense<0.000000e+00> : vector<8xf32>
    %107 = vector.multi_reduction <add>, %106, %cst_29 [1] : vector<8x8xf32> to vector<8xf32>
    %108 = vector.shape_cast %107 : vector<8xf32> to vector<8x1xf32>
    %109 = math.log %108 : vector<8x1xf32>
    %110 = arith.addf %109, %103 : vector<8x1xf32>
    %cst_30 = arith.constant dense<0xFF800000> : vector<8xf32>
    %111 = vector.multi_reduction <maximumf>, %10, %cst_30 [0] : vector<8x8xf32> to vector<8xf32>
    %112 = vector.shape_cast %111 : vector<8xf32> to vector<1x8xf32>
    %113 = vector.broadcast %112 : vector<1x8xf32> to vector<8x8xf32>
    %114 = arith.subf %10, %113 : vector<8x8xf32>
    %115 = math.exp %114 : vector<8x8xf32>
    %cst_31 = arith.constant dense<0.000000e+00> : vector<8xf32>
    %116 = vector.multi_reduction <add>, %115, %cst_31 [0] : vector<8x8xf32> to vector<8xf32>
    %117 = vector.shape_cast %116 : vector<8xf32> to vector<1x8xf32>
    %118 = math.log %117 : vector<1x8xf32>
    %119 = arith.addf %118, %112 : vector<1x8xf32>
    %120 = vector.shape_cast %110 : vector<8x1xf32> to vector<1x8x1xf32>
    %cst_32 = arith.constant dense<0.000000e+00> : vector<1xf32>
    %121 = vector.multi_reduction <add>, %120, %cst_32 [1, 2] : vector<1x8x1xf32> to vector<1xf32>
    %122 = vector.shape_cast %121 : vector<1xf32> to vector<1x1x1xf32>
    %123 = vector.extract %122[0, 0, 0] : f32 from vector<1x1x1xf32>
    %124 = vector.shape_cast %119 : vector<1x8xf32> to vector<1x1x8xf32>
    %cst_33 = arith.constant dense<0.000000e+00> : vector<1xf32>
    %125 = vector.multi_reduction <add>, %124, %cst_33 [1, 2] : vector<1x1x8xf32> to vector<1xf32>
    %126 = vector.shape_cast %125 : vector<1xf32> to vector<1x1x1xf32>
    %127 = vector.extract %126[0, 0, 0] : f32 from vector<1x1x1xf32>
    %128 = arith.addf %123, %127 : f32
    %cst_34 = arith.constant 1.250000e-01 : f32
    %129 = arith.mulf %128, %cst_34 : f32
    %cst_35 = arith.constant 2.000000e+00 : f32
    %130 = arith.mulf %cst_35, %35 : f32
    %131 = arith.subf %129, %130 : f32
    %132 = arith.addf %101, %131 : f32
    %c0_36 = arith.constant 0 : index
    %c0_37 = arith.constant 0 : index
    %133 = memref.load %arg2[%c0_36, %c0_37] : memref<1x1xf32, #tpu.memory_space<smem>>
    memref.store %132, %arg2[%c0_36, %c0_37] : memref<1x1xf32, #tpu.memory_space<smem>>
    return
  }
}

</mosaic_0001>

<llo_original>
// kernel: tpu_custom_call.1
$region0: #{tpu_custom_call.1}
  #allocation0 [shape = 'u32[]', space=smem, size = 0x4, offset = 0x4, fixed_abs, tag = 'smem constant byte address 0x4 - core index']
  #allocation1 [shape = 'u32[144,128]{1,0:T(1,128)}', space=vmem, size = 0x12000, scoped, tag = 'internal scratch']
  #allocation2 [shape = 'f32[1,1]{1,0:T(1,128)S(1)}', space=vmem, size = 0x200, scoped, tag = 'scoped memory for tpu_custom_call.1']
  %s0 = inlined_call_operand.<no memory space> [shape: f32[1,1], index: 0, kind: input, shape index: {}]
  %s1 = inlined_call_operand.hbm [shape: f32[32,32], index: 1, kind: input, shape index: {}]
  %s2 = inlined_call_operand.hbm [shape: f32[1,1], index: 2, kind: output, shape index: {}]
  %s3 = sld [smem:[#allocation0]]
  $region22: #{tpu_custom_call.1} parent=0
    _
  %s5 = ssub.s32 1, %s3
  %s6 = scalar_select 0, %s5, %s3
  %v7 = vstv %s0
  %8 = vst [vmem:[#allocation2] sm:$0x1] %v7
  $region1: #{tpu_custom_call.1} parent=0
    #allocation3 [shape = 'u8[16384]{0}', space=vmem, size = 0x4000, scoped, tag = 'input window, operand 1, single buffered']
    #allocation4 [shape = 's32[1]{0}', space=sflag, size = 0x4, scoped, tag = 'scoped memory for tpu_custom_call.1']
    #allocation5 [shape = 's32[1]{0}', space=sflag, size = 0x4, scoped, tag = 'scoped memory for tpu_custom_call.1']
    #allocation6 [shape = 'u8[512]{0}', space=smem, size = 0x200, scoped, tag = 'output window, operand 0, single buffered']
    %9 = vsyncpa [#allocation4], 0
    %10 = vsyncpa [#allocation5], 0
    // Predicated region
    $region2: #{tpu_custom_call.1} parent=1 // pred_check
      _
    $region3: #{tpu_custom_call.1} parent=1 // pred_check_branch
      %12 = sbr.rel (0) target = $region5
    $region4: #{tpu_custom_call.1} parent=1 // pred_region
      _
    $region5: #{tpu_custom_call.1} parent=1 // pred_fallthru
      _
    // Predicated region
    $region6: #{tpu_custom_call.1} parent=1 // pred_check
      _
    $region7: #{tpu_custom_call.1} parent=1 // pred_check_branch
      %14 = sbr.rel (0) target = $region9
    $region8: #{tpu_custom_call.1} parent=1 // pred_region
      %s16 = ssub.s32 512, 512
      %17 = vsyncadd [#allocation4], %s16
      %s18 = sshll.u32 [#allocation3], 4
      %s19 = int_to_ptr.vmem [resolvable:$true] %s18
      %24 = dma.hbm_to_vmem [thread:$0]  %s1, 512, %s19, [#allocation4], 128, 128, 8
    $region9: #{tpu_custom_call.1} parent=1 // pred_fallthru
      _
    // Predicated region
    $region10: #{tpu_custom_call.1} parent=1 // pred_check
      _
    $region11: #{tpu_custom_call.1} parent=1 // pred_check_branch
      %26 = sbr.rel (0) target = $region13
    $region12: #{tpu_custom_call.1} parent=1 // pred_region
      %27 = dma.done [#allocation4], 512
    $region13: #{tpu_custom_call.1} parent=1 // pred_fallthru
      _
    %v28 = vld [vmem:[#allocation3] sm:$0xff]
    %v29 = vld [vmem:[#allocation3 + $0x8] sm:$0xff]
    %v30 = vld [vmem:[#allocation3 + $0x10] sm:$0xff]
    %v31 = vld [vmem:[#allocation3 + $0x18] sm:$0xff]
    %vm32 = vcmask 261120
    %v34 = vsel %vm32, %v28, 0
    %v37 = vsel %vm32, %v29, 0
    %v40 = vsel %vm32, %v30, 0
    %v43 = vsel %vm32, %v31, 0
    %45 = vmatprep.subr.mxu0 0.0
    %46 = vmatpush1.xpose.msra.mxu0 0.0
    %47 = vmatprep.subr.mxu0 0.0
    %48 = vmatpush1.xpose.msra.mxu0 0.0
    %49 = vmatprep.subr.mxu0 0.0
    %50 = vmatpush1.xpose.msra.mxu0 0.0
    %51 = vmatprep.subr.mxu0 0.0
    %52 = vmatpush1.xpose.msra.mxu0 0.0
    %53 = vmatprep.subr.mxu0 0.0
    %54 = vmatpush1.xpose.msra.mxu0 0.0
    %55 = vmatprep.subr.mxu0 0.0
    %56 = vmatpush1.xpose.msra.mxu0 0.0
    %57 = vmatprep.subr.mxu0 0.0
    %58 = vmatpush1.xpose.msra.mxu0 0.0
    %59 = vmatprep.subr.mxu0 0.0
    %60 = vmatpush1.xpose.msra.mxu0 0.0
    %61 = vmatprep.subr.mxu0 0.0
    %62 = vmatpush1.xpose.msra.mxu0 0.0
    %63 = vmatprep.subr.mxu0 0.0
    %64 = vmatpush1.xpose.msra.mxu0 0.0
    %65 = vmatprep.subr.mxu0 0.0
    %66 = vmatpush1.xpose.msra.mxu0 0.0
    %67 = vmatprep.subr.mxu0 0.0
    %68 = vmatpush1.xpose.msra.mxu0 0.0
    %69 = vmatprep.subr.mxu0 0.0
    %70 = vmatpush1.xpose.msra.mxu0 0.0
    %71 = vmatprep.subr.mxu0 0.0
    %72 = vmatpush1.xpose.msra.mxu0 0.0
    %73 = vmatprep.subr.mxu0 0.0
    %74 = vmatpush1.xpose.msra.mxu0 %v43
    %75 = vmatprep.subr.mxu0 0.0
    %76 = vmatpush1.xpose.msra.mxu0 %v40
    %77 = vmatprep.subr.mxu0 0.0
    %78 = vmatpush2.xpose.msra.mxu0 0.0
    %79 = vmatprep.subr.mxu0 0.0
    %80 = vmatpush2.xpose.msra.mxu0 0.0
    %81 = vmatprep.subr.mxu0 0.0
    %82 = vmatpush2.xpose.msra.mxu0 0.0
    %83 = vmatprep.subr.mxu0 0.0
    %84 = vmatpush2.xpose.msra.mxu0 0.0
    %85 = vmatprep.subr.mxu0 0.0
    %86 = vmatpush2.xpose.msra.mxu0 0.0
    %87 = vmatprep.subr.mxu0 0.0
    %88 = vmatpush2.xpose.msra.mxu0 0.0
    %89 = vmatprep.subr.mxu0 0.0
    %90 = vmatpush2.xpose.msra.mxu0 0.0
    %91 = vmatprep.subr.mxu0 0.0
    %92 = vmatpush2.xpose.msra.mxu0 0.0
    %93 = vmatprep.subr.mxu0 0.0
    %94 = vmatpush2.xpose.msra.mxu0 0.0
    %95 = vmatprep.subr.mxu0 0.0
    %96 = vmatpush2.xpose.msra.mxu0 0.0
    %97 = vmatprep.subr.mxu0 0.0
    %98 = vmatpush2.xpose.msra.mxu0 0.0
    %99 = vmatprep.subr.mxu0 0.0
    %100 = vmatpush2.xpose.msra.mxu0 0.0
    %101 = vmatprep.subr.mxu0 0.0
    %102 = vmatpush2.xpose.msra.mxu0 0.0
    %103 = vmatprep.subr.mxu0 0.0
    %104 = vmatpush2.xpose.msra.mxu0 0.0
    %105 = vmatprep.subr.mxu0 0.0
    %106 = vmatpush2.xpose.msra.mxu0 0.0
    %107 = vmatprep.subr.mxu0 0.0
    %108 = vmatpush2.xpose.msra.mxu0 0.0
    %109 = vmatprep.mubr.f32.mxu0 0.0
    %110 = vmatmul.mubr.f32.gmra.mxu0 %v34
    %v111 = vpop.f32.mrf.mxu0
    %v112 = vadd.f32 0.0, %v111
    %v113 = vpop.f32.mrf.mxu0
    %114 = vmatprep.mubr.f32.mxu0 0.0
    %115 = vmatmul.mubr.f32.gmra.mxu0 %v37
    %v116 = vpop.f32.mrf.mxu0
    %v117 = vadd.f32 0.0, %v116
    %v118 = vpop.f32.mrf.mxu0
    %119 = vdwg.mxu0
    %v120 = vld [vmem:[#allocation2] sm:$0x1]
    %v121 = vmul.f32 %v120, 1.442695
    %v122 = vpow.pop %v121
    %v124 = vlaneseq
    %v125 = vshrl.u32 %v124, 7
    %v126 = vsub.s32 0, %v125
    %v127 = vrot.slane %v122, %v126
    %128 = vset.pattern.permute.xlu0 0
    %129 = vperm.xlu0 %128, %v127
    %v130 = vpop.permute.xlu0 %129
    %v132 = vmul.f32 %v112, %v130
    %v133 = vmul.f32 %v117, %v130
    %v134 = vlaneseq
    %v135 = vshrl.u32 %v134, 7
    %v136 = vadd.s32 %v135, 8
    %v137 = vlaneseq
    %v138 = vand.u32 %v137, 127
    %vm139 = vcmp.eq.s32.totalorder %v135, %v138
    %vm140 = vcmp.eq.s32.totalorder %v136, %v138
    %v141 = vsel %vm139, %v132, 0.0
    %v142 = vsel %vm140, %v133, 0.0
    %v143 = vadd.s32 %v136, 8
    %vm144 = vcmp.eq.s32.totalorder %v138, %v136
    %vm145 = vcmp.eq.s32.totalorder %v138, %v143
    %v146 = vsel %vm144, %v132, 0.0
    %v147 = vsel %vm145, %v133, 0.0
    %vm148 = vcmp.lt.s32.totalorder %v135, 8
    %vm149 = vcmp.lt.s32.totalorder %v136, 8
    %v150 = vsel %vm148, %v141, 0.0
    %v151 = vsel %vm149, %v142, 0.0
    %vm152 = vcmask 130048
    %v153 = vsel %vm152, %v150, 0.0
    %v154 = vsel %vm152, %v151, 0.0
    %v155 = vadd.f32 %v153, %v154
    %156 = vadd.xlane.f32.xlu0 %v155
    %v157 = vpop.xlane.xlu0 %156
    %v158 = vrot.slane %v157, 4
    %v159 = vadd.f32 %v157, %v158
    %v160 = vrot.slane %v159, 2
    %v161 = vadd.f32 %v159, %v160
    %v162 = vrot.slane %v161, 1
    %v163 = vadd.f32 %v161, %v162
    %s164 = vtos %v163
    %s165 = smul.f32 %s164, 0.125
    %vm166 = vcmp.ge.s32.totalorder %v135, 8
    %vm167 = vcmp.ge.s32.totalorder %v136, 8
    %v168 = vsel %vm166, %v141, 0.0
    %v169 = vsel %vm167, %v142, 0.0
    %v170 = vsel %vm152, %v168, 0.0
    %v171 = vsel %vm152, %v169, 0.0
    %v172 = vadd.f32 %v170, %v171
    %173 = vadd.xlane.f32.xlu0 %v172
    %v174 = vpop.xlane.xlu0 %173
    %v175 = vrot.slane %v174, 4
    %v176 = vadd.f32 %v174, %v175
    %v177 = vrot.slane %v176, 2
    %v178 = vadd.f32 %v176, %v177
    %v179 = vrot.slane %v178, 1
    %v180 = vadd.f32 %v178, %v179
    %s181 = vtos %v180
    %s182 = smul.f32 %s181, 0.125
    %v183 = vsel %vm152, %v146, 0.0
    %v184 = vsel %vm152, %v147, 0.0
    %v185 = vadd.f32 %v183, %v184
    %186 = vadd.xlane.f32.xlu0 %v185
    %v187 = vpop.xlane.xlu0 %186
    %v188 = vrot.slane %v187, 4
    %v189 = vadd.f32 %v187, %v188
    %v190 = vrot.slane %v189, 2
    %v191 = vadd.f32 %v189, %v190
    %v192 = vrot.slane %v191, 1
    %v193 = vadd.f32 %v191, %v192
    %s194 = vtos %v193
    %s195 = smul.f32 %s194, 0.125
    %vm196 = vcmask 64512
    %v197 = vsel %vm196, %v132, -inf
    %198 = vmax.xlane.f32.xlu0 %v197
    %v199 = vpop.xlane.xlu0 %198
    %v200 = vsub.f32 %v132, %v199
    %v201 = vmul.f32 %v200, 1.442695
    %v202 = vpow.pop %v201
    %v203 = vsel %vm196, %v202, 0.0
    %204 = vadd.xlane.f32.xlu0 %v203
    %v205 = vpop.xlane.xlu0 %204
    %v206 = vlog2.pop %v205
    %v207 = vmul.f32 %v206, 0.6931472
    %v208 = vadd.f32 %v207, %v199
    %v209 = vrot.slane %v197, 4
    %v210 = vmax.f32 %v197, %v209
    %v211 = vrot.slane %v210, 2
    %v212 = vmax.f32 %v210, %v211
    %v213 = vrot.slane %v212, 1
    %v214 = vmax.f32 %v212, %v213
    %v215 = vsub.f32 %v132, %v214
    %v216 = vmul.f32 %v215, 1.442695
    %v217 = vpow.pop %v216
    %v218 = vsel %vm196, %v217, 0.0
    %v219 = vrot.slane %v218, 4
    %v220 = vadd.f32 %v218, %v219
    %v221 = vrot.slane %v220, 2
    %v222 = vadd.f32 %v220, %v221
    %v223 = vrot.slane %v222, 1
    %v224 = vadd.f32 %v222, %v223
    %v225 = vlog2.pop %v224
    %v226 = vmul.f32 %v225, 0.6931472
    %v227 = vadd.f32 %v226, %v214
    %vm228 = vcmask 7168
    %v229 = vsel %vm228, %v208, 0.0
    %230 = vadd.xlane.f32.xlu0 %v229
    %v231 = vpop.xlane.xlu0 %230
    %v232 = vrot.slane %v231, 4
    %v233 = vadd.f32 %v231, %v232
    %v234 = vrot.slane %v233, 2
    %v235 = vadd.f32 %v233, %v234
    %v236 = vrot.slane %v235, 1
    %v237 = vadd.f32 %v235, %v236
    %s238 = vtos %v237
    %vm239 = vcmask 57344
    %v240 = vsel %vm239, %v227, 0.0
    %241 = vadd.xlane.f32.xlu0 %v240
    %v242 = vpop.xlane.xlu0 %241
    %v243 = vrot.slane %v242, 4
    %v244 = vadd.f32 %v242, %v243
    %v245 = vrot.slane %v244, 2
    %v246 = vadd.f32 %v244, %v245
    %v247 = vrot.slane %v246, 1
    %v248 = vadd.f32 %v246, %v247
    %s249 = vtos %v248
    %s250 = sadd.f32 %s238, %s249
    %s251 = smul.f32 %s250, 0.125
    %s252 = smul.f32 %s165, 2.0
    %s253 = ssub.f32 %s251, %s252
    %vm254 = vcmask 130112
    %v255 = vsel %vm254, %v132, -inf
    %256 = vmax.xlane.f32.xlu0 %v255
    %v257 = vpop.xlane.xlu0 %256
    %v258 = vsub.f32 %v132, %v257
    %v259 = vmul.f32 %v258, 1.442695
    %v260 = vpow.pop %v259
    %262 = vrot.lane.b32.xlu0 %v260, 120
    %v263 = vpop.permute.xlu0 %262
    %v265 = vsel %vm196, %v263, 0.0
    %266 = vadd.xlane.f32.xlu0 %v265
    %v267 = vpop.xlane.xlu0 %266
    %v268 = vlog2.pop %v267
    %v269 = vmul.f32 %v268, 0.6931472
    %v270 = vadd.f32 %v269, %v257
    %v271 = vrot.slane %v255, 4
    %v272 = vmax.f32 %v255, %v271
    %v273 = vrot.slane %v272, 2
    %v274 = vmax.f32 %v272, %v273
    %v275 = vrot.slane %v274, 1
    %v276 = vmax.f32 %v274, %v275
    %v277 = vsub.f32 %v132, %v276
    %v278 = vmul.f32 %v277, 1.442695
    %v279 = vpow.pop %v278
    %v280 = vsel %vm254, %v279, 0.0
    %v281 = vrot.slane %v280, 4
    %v282 = vadd.f32 %v280, %v281
    %v283 = vrot.slane %v282, 2
    %v284 = vadd.f32 %v282, %v283
    %v285 = vrot.slane %v284, 1
    %v286 = vadd.f32 %v284, %v285
    %v287 = vlog2.pop %v286
    %v288 = vmul.f32 %v287, 0.6931472
    %v289 = vadd.f32 %v288, %v276
    %v290 = vsel %vm228, %v270, 0.0
    %291 = vadd.xlane.f32.xlu0 %v290
    %v292 = vpop.xlane.xlu0 %291
    %v293 = vrot.slane %v292, 4
    %v294 = vadd.f32 %v292, %v293
    %v295 = vrot.slane %v294, 2
    %v296 = vadd.f32 %v294, %v295
    %v297 = vrot.slane %v296, 1
    %v298 = vadd.f32 %v296, %v297
    %s299 = vtos %v298
    %301 = vrot.lane.b32.xlu0 %v289, 120
    %v302 = vpop.permute.xlu0 %301
    %v304 = vsel %vm239, %v302, 0.0
    %305 = vadd.xlane.f32.xlu0 %v304
    %v306 = vpop.xlane.xlu0 %305
    %v307 = vrot.slane %v306, 4
    %v308 = vadd.f32 %v306, %v307
    %v309 = vrot.slane %v308, 2
    %v310 = vadd.f32 %v308, %v309
    %v311 = vrot.slane %v310, 1
    %v312 = vadd.f32 %v310, %v311
    %s313 = vtos %v312
    %s314 = sadd.f32 %s299, %s313
    %s315 = smul.f32 %s314, 0.125
    %s316 = smul.f32 %s195, 2.0
    %s317 = ssub.f32 %s315, %s316
    %s318 = sadd.f32 %s253, %s317
    %v319 = vsel %vm254, %v133, -inf
    %320 = vmax.xlane.f32.xlu0 %v319
    %v321 = vpop.xlane.xlu0 %320
    %v322 = vsub.f32 %v133, %v321
    %v323 = vmul.f32 %v322, 1.442695
    %v324 = vpow.pop %v323
    %326 = vrot.lane.b32.xlu0 %v324, 120
    %v327 = vpop.permute.xlu0 %326
    %v329 = vsel %vm196, %v327, 0.0
    %330 = vadd.xlane.f32.xlu0 %v329
    %v331 = vpop.xlane.xlu0 %330
    %v332 = vlog2.pop %v331
    %v333 = vmul.f32 %v332, 0.6931472
    %v334 = vadd.f32 %v333, %v321
    %v335 = vrot.slane %v319, 4
    %v336 = vmax.f32 %v319, %v335
    %v337 = vrot.slane %v336, 2
    %v338 = vmax.f32 %v336, %v337
    %v339 = vrot.slane %v338, 1
    %v340 = vmax.f32 %v338, %v339
    %v341 = vsub.f32 %v133, %v340
    %v342 = vmul.f32 %v341, 1.442695
    %v343 = vpow.pop %v342
    %v344 = vsel %vm254, %v343, 0.0
    %v345 = vrot.slane %v344, 4
    %v346 = vadd.f32 %v344, %v345
    %v347 = vrot.slane %v346, 2
    %v348 = vadd.f32 %v346, %v347
    %v349 = vrot.slane %v348, 1
    %v350 = vadd.f32 %v348, %v349
    %v351 = vlog2.pop %v350
    %v352 = vmul.f32 %v351, 0.6931472
    %v353 = vadd.f32 %v352, %v340
    %v354 = vsel %vm228, %v334, 0.0
    %355 = vadd.xlane.f32.xlu0 %v354
    %v356 = vpop.xlane.xlu0 %355
    %v357 = vrot.slane %v356, 4
    %v358 = vadd.f32 %v356, %v357
    %v359 = vrot.slane %v358, 2
    %v360 = vadd.f32 %v358, %v359
    %v361 = vrot.slane %v360, 1
    %v362 = vadd.f32 %v360, %v361
    %s363 = vtos %v362
    %365 = vrot.lane.b32.xlu0 %v353, 120
    %v366 = vpop.permute.xlu0 %365
    %v368 = vsel %vm239, %v366, 0.0
    %369 = vadd.xlane.f32.xlu0 %v368
    %v370 = vpop.xlane.xlu0 %369
    %v371 = vrot.slane %v370, 4
    %v372 = vadd.f32 %v370, %v371
    %v373 = vrot.slane %v372, 2
    %v374 = vadd.f32 %v372, %v373
    %v375 = vrot.slane %v374, 1
    %v376 = vadd.f32 %v374, %v375
    %s377 = vtos %v376
    %s378 = sadd.f32 %s363, %s377
    %s379 = smul.f32 %s378, 0.125
    %s380 = smul.f32 %s182, 2.0
    %s381 = ssub.f32 %s379, %s380
    %s382 = sadd.f32 %s318, %s381
    %s383 = scalar_lea.smem [#allocation6], 0
    %384 = sst [smem:[%s383]] %s382
    // Predicated region
    $region14: #{tpu_custom_call.1} parent=1 // pred_check
      _
    $region15: #{tpu_custom_call.1} parent=1 // pred_check_branch
      %386 = sbr.rel (0) target = $region17
    $region16: #{tpu_custom_call.1} parent=1 // pred_region
      %s388 = ssub.s32 16, 16
      %389 = vsyncadd [#allocation5], %s388
      %392 = dma.smem_to_hbm [#allocation6], 16, %s2, [#allocation5]
    $region17: #{tpu_custom_call.1} parent=1 // pred_fallthru
      _
    // Predicated region
    $region18: #{tpu_custom_call.1} parent=1 // pred_check
      _
    $region19: #{tpu_custom_call.1} parent=1 // pred_check_branch
      %394 = sbr.rel (0) target = $region21
    $region20: #{tpu_custom_call.1} parent=1 // pred_region
      %395 = dma.done [#allocation5], 16
    $region21: #{tpu_custom_call.1} parent=1 // pred_fallthru
      _
    %396 = sfence
    %397 = vsyncpa [#allocation4], 1
    %398 = vsyncpa [#allocation5], 1

</llo_original>
